<compile_context>
chip_gen: v5e
topology: v5e:2x2
jax: 0.10.0
libtpu: 0.0.40
codegen_flags: <defaults>
</compile_context>

<pallas_src>
import jax
import jax.numpy as jnp
from jax.experimental import pallas as pl
from jax.experimental.pallas import tpu as pltpu

_F = 81  # 9 * 9 flattened feature axis


def bgc_prox_kernel(z1_ref, z2_ref, p1_ref, p2_ref, p3_ref, w_ref, b_ref,
                    out_ref):
    z1 = z1_ref[...]            # (TB, 81)
    z2 = z2_ref[...]            # (TB, 81)

    # Linear along the last dim of the original (B, 9, 9), expressed as one
    # dense MXU matmul against the block-diagonal (81, 81) weight.
    lin = jnp.dot(z2, w_ref[...],
                  preferred_element_type=jnp.float32) + b_ref[...]

    zy_temp = p1_ref[...] * jnp.exp(p2_ref[...] * z1)   # exp -> EUP slot
    zy_light = p3_ref[...] * z2 * z2 + lin
    out_ref[...] = (zy_temp + zy_light).astype(out_ref.dtype)


def bgc_prox(z1, z2, par1, par2, par3, w, b, *, block_b=2048):
    """z1, z2: (B, 9, 9); par*: (9, 9); w: (9, 9); b: (9,) -> (B, 9, 9)."""
    B = z1.shape[0]

    # Lane-dense flattened views (contiguous reshapes; free outside kernel).
    z1f = z1.reshape(B, _F)
    z2f = z2.reshape(B, _F)
    p1 = par1.reshape(1, _F)
    p2 = par2.reshape(1, _F)
    p3 = par3.reshape(1, _F)

    # out_flat[b, i*9+k] = sum_j z2_flat[b, i*9+j] * W[k, j] + bias[k]
    #   => block-diagonal weight with block (i, i) = W.T; bias tiled 9x.
    w_big = jnp.kron(jnp.eye(9, dtype=w.dtype), w.T)     # (81, 81)
    b_tile = jnp.tile(b.reshape(1, 9), (1, 9))            # (1, 81)

    # Batch tile: multiple of 8 sublanes; big enough to amortize per-step
    # pipeline overhead (~0.35 us), small enough to stay well under VMEM.
    tb = min(block_b, ((B + 7) // 8) * 8)
    tb = max(8, ((tb + 7) // 8) * 8)
    grid = (pl.cdiv(B, tb),)   # ragged edge handled by clamped edge blocks

    batched_spec = pl.BlockSpec((tb, _F), lambda i: (i, 0))
    param_spec = pl.BlockSpec((1, _F), lambda i: (0, 0))
    weight_spec = pl.BlockSpec((_F, _F), lambda i: (0, 0))

    out_flat = pl.pallas_call(
        bgc_prox_kernel,
        out_shape=jax.ShapeDtypeStruct((B, _F), z1.dtype),
        grid=grid,
        in_specs=[
            batched_spec,   # z1
            batched_spec,   # z2
            param_spec,     # par1
            param_spec,     # par2
            param_spec,     # par3
            weight_spec,    # block-diagonal lin weight
            param_spec,     # tiled bias
        ],
        out_specs=batched_spec,
        compiler_params=pltpu.CompilerParams(
            dimension_semantics=("parallel",)),
    )(z1f, z2f, p1, p2, p3, w_big, b_tile)

    return out_flat.reshape(B, 9, 9)


def bgc_prox_ref(z1, z2, par1, par2, par3, w, b):
    zy_temp = par1 * jnp.exp(par2 * z1)
    lin = jnp.einsum('bij,kj->bik', z2, w) + b[None, None, :]
    zy_light = par3 * z2 * z2 + lin
    return zy_temp + zy_light


if __name__ == "__main__":
    key = jax.random.PRNGKey(0)
    _, k_p1, k_p2, k_p3, k_w, k_b = jax.random.split(key, 6)

    # Deterministic synthetic parameters (PyTorch __init__ uses zeros for
    # par1/2/3; small random values keep the check numerically nontrivial).
    par1 = 0.1 * jax.random.normal(k_p1, (9, 9), dtype=jnp.float32)
    par2 = 0.1 * jax.random.normal(k_p2, (9, 9), dtype=jnp.float32)
    par3 = 0.1 * jax.random.normal(k_p3, (9, 9), dtype=jnp.float32)
    bound = 1.0 / jnp.sqrt(9.0)
    w = jax.random.uniform(k_w, (9, 9), jnp.float32, -bound, bound)
    b = jax.random.uniform(k_b, (9,), jnp.float32, -bound, bound)
    # TODO(synk): the module also prints torch.mean(par1/2/3) in forward
    # (host-side side effect only); omitted here to keep output to KERNEL_OK.

    ok = True
    # (B, block_b): small batch, non-multiple-of-8 batch, multi-block ragged grid.
    for B, blk in ((2, 2048), (37, 2048), (200, 64)):
        kz1, kz2 = jax.random.split(jax.random.fold_in(key, B))
        z1 = jax.random.normal(kz1, (B, 9, 9), dtype=jnp.float32)
        z2 = jax.random.normal(kz2, (B, 9, 9), dtype=jnp.float32)

        out = bgc_prox(z1, z2, par1, par2, par3, w, b, block_b=blk)
        out = jax.block_until_ready(out)
        ref = bgc_prox_ref(z1, z2, par1, par2, par3, w, b)

        ok = ok and (out.shape == (B, 9, 9))
        ok = ok and bool(jnp.allclose(out, ref, atol=1e-5, rtol=1e-5))

    assert ok
    print("KERNEL_OK")
</pallas_src>

<mosaic_0001>
module attributes {stable_mosaic.version = 11 : i64} {
  func.func @bgc_prox_kernel(%arg0: i32, %arg1: memref<8x81xf32, #tpu.memory_space<vmem>>, %arg2: memref<8x81xf32, #tpu.memory_space<vmem>>, %arg3: memref<1x81xf32, #tpu.memory_space<vmem>>, %arg4: memref<1x81xf32, #tpu.memory_space<vmem>>, %arg5: memref<1x81xf32, #tpu.memory_space<vmem>>, %arg6: memref<81x81xf32, #tpu.memory_space<vmem>>, %arg7: memref<1x81xf32, #tpu.memory_space<vmem>>, %arg8: memref<8x81xf32, #tpu.memory_space<vmem>>) attributes {dimension_semantics = [#tpu.dimension_semantics<parallel>], iteration_bounds = array<i64: 1>, scalar_prefetch = 0 : i64, scratch_operands = 0 : i64, tpu.core_type = #tpu.core_type<tc>, window_params = [{transform_indices = @transform_0, window_bounds = array<i64: 8, 81>}, {transform_indices = @transform_1, window_bounds = array<i64: 8, 81>}, {pipeline_mode = #tpu.pipeline_mode<synchronous>, transform_indices = @transform_2, window_bounds = array<i64: 1, 81>}, {pipeline_mode = #tpu.pipeline_mode<synchronous>, transform_indices = @transform_3, window_bounds = array<i64: 1, 81>}, {pipeline_mode = #tpu.pipeline_mode<synchronous>, transform_indices = @transform_4, window_bounds = array<i64: 1, 81>}, {pipeline_mode = #tpu.pipeline_mode<synchronous>, transform_indices = @transform_5, window_bounds = array<i64: 81, 81>}, {pipeline_mode = #tpu.pipeline_mode<synchronous>, transform_indices = @transform_6, window_bounds = array<i64: 1, 81>}, {transform_indices = @transform_7, window_bounds = array<i64: 8, 81>}]} {
    %c0 = arith.constant 0 : index
    %c0_0 = arith.constant 0 : index
    %0 = vector.load %arg1[%c0, %c0_0] : memref<8x81xf32, #tpu.memory_space<vmem>>, vector<8x81xf32>
    %c0_1 = arith.constant 0 : index
    %c0_2 = arith.constant 0 : index
    %1 = vector.load %arg2[%c0_1, %c0_2] : memref<8x81xf32, #tpu.memory_space<vmem>>, vector<8x81xf32>
    %c0_3 = arith.constant 0 : index
    %c0_4 = arith.constant 0 : index
    %2 = vector.load %arg6[%c0_3, %c0_4] : memref<81x81xf32, #tpu.memory_space<vmem>>, vector<81x81xf32>
    %cst = arith.constant dense<0.000000e+00> : vector<8x81xf32>
    %3 = tpu.matmul %1, %2, %cst {dimension_numbers = #tpu.dot_dimension_numbers<[1], [0], [0], [1], [0, 0, 1, 1], [], []>} : vector<8x81xf32>, vector<81x81xf32>, vector<8x81xf32> -> vector<8x81xf32>
    %c0_5 = arith.constant 0 : index
    %c0_6 = arith.constant 0 : index
    %4 = vector.load %arg7[%c0_5, %c0_6] : memref<1x81xf32, #tpu.memory_space<vmem>>, vector<1x81xf32>
    %5 = vector.broadcast %4 : vector<1x81xf32> to vector<8x81xf32>
    %6 = arith.addf %3, %5 : vector<8x81xf32>
    %c0_7 = arith.constant 0 : index
    %c0_8 = arith.constant 0 : index
    %7 = vector.load %arg3[%c0_7, %c0_8] : memref<1x81xf32, #tpu.memory_space<vmem>>, vector<1x81xf32>
    %c0_9 = arith.constant 0 : index
    %c0_10 = arith.constant 0 : index
    %8 = vector.load %arg4[%c0_9, %c0_10] : memref<1x81xf32, #tpu.memory_space<vmem>>, vector<1x81xf32>
    %9 = vector.broadcast %8 : vector<1x81xf32> to vector<8x81xf32>
    %10 = arith.mulf %9, %0 : vector<8x81xf32>
    %11 = math.exp %10 : vector<8x81xf32>
    %12 = vector.broadcast %7 : vector<1x81xf32> to vector<8x81xf32>
    %13 = arith.mulf %12, %11 : vector<8x81xf32>
    %c0_11 = arith.constant 0 : index
    %c0_12 = arith.constant 0 : index
    %14 = vector.load %arg5[%c0_11, %c0_12] : memref<1x81xf32, #tpu.memory_space<vmem>>, vector<1x81xf32>
    %15 = vector.broadcast %14 : vector<1x81xf32> to vector<8x81xf32>
    %16 = arith.mulf %15, %1 : vector<8x81xf32>
    %17 = arith.mulf %16, %1 : vector<8x81xf32>
    %18 = arith.addf %17, %6 : vector<8x81xf32>
    %19 = arith.addf %13, %18 : vector<8x81xf32>
    %c0_13 = arith.constant 0 : index
    %c0_14 = arith.constant 0 : index
    %20 = vector.load %arg8[%c0_13, %c0_14] : memref<8x81xf32, #tpu.memory_space<vmem>>, vector<8x81xf32>
    tpu.vector_store %arg8[%c0_13, %c0_14], %19 {strides = array<i32>} : memref<8x81xf32, #tpu.memory_space<vmem>>, vector<8x81xf32>,
    return
  }
  func.func @transform_0(%arg0: i32) -> (i32, i32) {
    %c0_i32 = arith.constant 0 : i32
    %c0_i32_0 = arith.constant 0 : i32
    return %arg0, %c0_i32 : i32, i32
  }
  func.func @transform_1(%arg0: i32) -> (i32, i32) {
    %c0_i32 = arith.constant 0 : i32
    %c0_i32_0 = arith.constant 0 : i32
    return %arg0, %c0_i32 : i32, i32
  }
  func.func @transform_2(%arg0: i32) -> (i32, i32) {
    %c0_i32 = arith.constant 0 : i32
    %c0_i32_0 = arith.constant 0 : i32
    %c0_i32_1 = arith.constant 0 : i32
    return %c0_i32, %c0_i32_0 : i32, i32
  }
  func.func @transform_3(%arg0: i32) -> (i32, i32) {
    %c0_i32 = arith.constant 0 : i32
    %c0_i32_0 = arith.constant 0 : i32
    %c0_i32_1 = arith.constant 0 : i32
    return %c0_i32, %c0_i32_0 : i32, i32
  }
  func.func @transform_4(%arg0: i32) -> (i32, i32) {
    %c0_i32 = arith.constant 0 : i32
    %c0_i32_0 = arith.constant 0 : i32
    %c0_i32_1 = arith.constant 0 : i32
    return %c0_i32, %c0_i32_0 : i32, i32
  }
  func.func @transform_5(%arg0: i32) -> (i32, i32) {
    %c0_i32 = arith.constant 0 : i32
    %c0_i32_0 = arith.constant 0 : i32
    %c0_i32_1 = arith.constant 0 : i32
    return %c0_i32, %c0_i32_0 : i32, i32
  }
  func.func @transform_6(%arg0: i32) -> (i32, i32) {
    %c0_i32 = arith.constant 0 : i32
    %c0_i32_0 = arith.constant 0 : i32
    %c0_i32_1 = arith.constant 0 : i32
    return %c0_i32, %c0_i32_0 : i32, i32
  }
  func.func @transform_7(%arg0: i32) -> (i32, i32) {
    %c0_i32 = arith.constant 0 : i32
    %c0_i32_0 = arith.constant 0 : i32
    return %arg0, %c0_i32 : i32, i32
  }
}

</mosaic_0001>

<llo_original>
// kernel: tpu_custom_call.1
$region0: #{tpu_custom_call.1}
  #allocation0 [shape = 'u32[]', space=smem, size = 0x4, offset = 0x4, fixed_abs, tag = 'smem constant byte address 0x4 - core index']
  #allocation1 [shape = 'u32[72,128]{1,0:T(1,128)}', space=vmem, size = 0x9000, scoped, tag = 'internal scratch']
  %s0 = inlined_call_operand.hbm [shape: f32[2,81], index: 0, kind: input, shape index: {}]
  %s1 = inlined_call_operand.hbm [shape: f32[2,81], index: 1, kind: input, shape index: {}]
  %s2 = inlined_call_operand.vmem [shape: f32[1,81], index: 2, kind: input, shape index: {}]
  %s3 = inlined_call_operand.vmem [shape: f32[1,81], index: 3, kind: input, shape index: {}]
  %s4 = inlined_call_operand.vmem [shape: f32[1,81], index: 4, kind: input, shape index: {}]
  %s5 = inlined_call_operand.hbm [shape: f32[81,81], index: 5, kind: input, shape index: {}]
  %s6 = inlined_call_operand.vmem [shape: f32[1,81], index: 6, kind: input, shape index: {}]
  %s7 = inlined_call_operand.hbm [shape: f32[2,81], index: 7, kind: output, shape index: {}]
  %s8 = sld [smem:[#allocation0]]
  $region50: #{tpu_custom_call.1} parent=0
    _
  %s10 = ssub.s32 1, %s8
  %s11 = scalar_select 0, %s10, %s8
  $region1: #{tpu_custom_call.1} parent=0
    #allocation2 [shape = 'u8[4096]{0}', space=vmem, size = 0x1000, scoped, tag = 'input window, operand 0, single buffered']
    #allocation3 [shape = 's32[1]{0}', space=sflag, size = 0x4, scoped, tag = 'scoped memory for tpu_custom_call.1']
    #allocation4 [shape = 's32[1]{0}', space=sflag, size = 0x4, scoped, tag = 'scoped memory for tpu_custom_call.1']
    #allocation5 [shape = 'u8[4096]{0}', space=vmem, size = 0x1000, scoped, tag = 'input window, operand 1, single buffered']
    #allocation6 [shape = 's32[1]{0}', space=sflag, size = 0x4, scoped, tag = 'scoped memory for tpu_custom_call.1']
    #allocation7 [shape = 'u8[45056]{0}', space=vmem, size = 0xb000, scoped, tag = 'input window, operand 5, single buffered']
    #allocation8 [shape = 'u8[4096]{0}', space=vmem, size = 0x1000, scoped, tag = 'output window, operand 0, single buffered']
    %12 = vsyncpa [#allocation3], 0
    %13 = vsyncpa [#allocation6], 0
    %14 = vsyncpa [#allocation4], 0
    // Predicated region
    $region2: #{tpu_custom_call.1} parent=1 // pred_check
      _
    $region3: #{tpu_custom_call.1} parent=1 // pred_check_branch
      %16 = sbr.rel (0) target = $region5
    $region4: #{tpu_custom_call.1} parent=1 // pred_region
      %18 = vsyncadd [#allocation3], 96
      %s19 = sshll.u32 %s0, 4
      %s20 = int_to_ptr.hbm [resolvable:$true] %s19
      %s21 = sshll.u32 [#allocation2], 4
      %s22 = int_to_ptr.vmem [resolvable:$true] %s21
      %27 = dma.hbm_to_vmem [thread:$0]  %s20, 32, %s22, [#allocation3], 32, 32, 2
    $region5: #{tpu_custom_call.1} parent=1 // pred_fallthru
      _
    // Predicated region
    $region6: #{tpu_custom_call.1} parent=1 // pred_check
      _
    $region7: #{tpu_custom_call.1} parent=1 // pred_check_branch
      %29 = sbr.rel (0) target = $region9
    $region8: #{tpu_custom_call.1} parent=1 // pred_region
      %31 = vsyncadd [#allocation6], 96
      %s32 = sshll.u32 %s1, 4
      %s33 = int_to_ptr.hbm [resolvable:$true] %s32
      %s34 = sshll.u32 [#allocation5], 4
      %s35 = int_to_ptr.vmem [resolvable:$true] %s34
      %40 = dma.hbm_to_vmem [thread:$0]  %s33, 32, %s35, [#allocation6], 32, 32, 2
    $region9: #{tpu_custom_call.1} parent=1 // pred_fallthru
      _
    // Predicated region
    $region10: #{tpu_custom_call.1} parent=1 // pred_check
      _
    $region11: #{tpu_custom_call.1} parent=1 // pred_check_branch
      %42 = sbr.rel (0) target = $region13
    $region12: #{tpu_custom_call.1} parent=1 // pred_region
      _
    $region13: #{tpu_custom_call.1} parent=1 // pred_fallthru
      _
    // Predicated region
    $region14: #{tpu_custom_call.1} parent=1 // pred_check
      _
    $region15: #{tpu_custom_call.1} parent=1 // pred_check_branch
      %44 = sbr.rel (0) target = $region17
    $region16: #{tpu_custom_call.1} parent=1 // pred_region
      _
    $region17: #{tpu_custom_call.1} parent=1 // pred_fallthru
      _
    // Predicated region
    $region18: #{tpu_custom_call.1} parent=1 // pred_check
      _
    $region19: #{tpu_custom_call.1} parent=1 // pred_check_branch
      %46 = sbr.rel (0) target = $region21
    $region20: #{tpu_custom_call.1} parent=1 // pred_region
      _
    $region21: #{tpu_custom_call.1} parent=1 // pred_fallthru
      _
    // Predicated region
    $region22: #{tpu_custom_call.1} parent=1 // pred_check
      _
    $region23: #{tpu_custom_call.1} parent=1 // pred_check_branch
      %48 = sbr.rel (0) target = $region25
    $region24: #{tpu_custom_call.1} parent=1 // pred_region
      %50 = vsyncadd [#allocation6], 0
      %s51 = sshll.u32 %s5, 4
      %s52 = int_to_ptr.hbm [resolvable:$true] %s51
      %s53 = sshll.u32 [#allocation7], 4
      %s54 = int_to_ptr.vmem [resolvable:$true] %s53
      %59 = dma.hbm_to_vmem [thread:$0]  %s52, 1408, %s54, [#allocation6], 128, 128, 8
    $region25: #{tpu_custom_call.1} parent=1 // pred_fallthru
      _
    // Predicated region
    $region26: #{tpu_custom_call.1} parent=1 // pred_check
      _
    $region27: #{tpu_custom_call.1} parent=1 // pred_check_branch
      %61 = sbr.rel (0) target = $region29
    $region28: #{tpu_custom_call.1} parent=1 // pred_region
      _
    $region29: #{tpu_custom_call.1} parent=1 // pred_fallthru
      _
    // Predicated region
    $region30: #{tpu_custom_call.1} parent=1 // pred_check
      _
    $region31: #{tpu_custom_call.1} parent=1 // pred_check_branch
      %63 = sbr.rel (0) target = $region33
    $region32: #{tpu_custom_call.1} parent=1 // pred_region
      %65 = dma.done [#allocation3], 128
    $region33: #{tpu_custom_call.1} parent=1 // pred_fallthru
      _
    // Predicated region
    $region34: #{tpu_custom_call.1} parent=1 // pred_check
      _
    $region35: #{tpu_custom_call.1} parent=1 // pred_check_branch
      %67 = sbr.rel (0) target = $region37
    $region36: #{tpu_custom_call.1} parent=1 // pred_region
      %69 = dma.done [#allocation6], 128
    $region37: #{tpu_custom_call.1} parent=1 // pred_fallthru
      _
    // Predicated region
    $region38: #{tpu_custom_call.1} parent=1 // pred_check
      _
    $region39: #{tpu_custom_call.1} parent=1 // pred_check_branch
      %71 = sbr.rel (0) target = $region41
    $region40: #{tpu_custom_call.1} parent=1 // pred_region
      %73 = dma.done [#allocation6], 1408
    $region41: #{tpu_custom_call.1} parent=1 // pred_fallthru
      _
    %v74 = vld [vmem:[#allocation2] sm:$0xff]
    %v75 = vld [vmem:[#allocation5] sm:$0xff]
    %v76 = vld [vmem:[#allocation7] sm:$0xff]
    %v77 = vld [vmem:[#allocation7 + $0x8] sm:$0xff]
    %v78 = vld [vmem:[#allocation7 + $0x10] sm:$0xff]
    %v79 = vld [vmem:[#allocation7 + $0x18] sm:$0xff]
    %v80 = vld [vmem:[#allocation7 + $0x20] sm:$0xff]
    %v81 = vld [vmem:[#allocation7 + $0x28] sm:$0xff]
    %v82 = vld [vmem:[#allocation7 + $0x30] sm:$0xff]
    %v83 = vld [vmem:[#allocation7 + $0x38] sm:$0xff]
    %v84 = vld [vmem:[#allocation7 + $0x40] sm:$0xff]
    %v85 = vld [vmem:[#allocation7 + $0x48] sm:$0xff]
    %v86 = vld [vmem:[#allocation7 + $0x50] sm:$0x1]
    %v87 = vld [vmem:[%s6] sm:$0x1]
    %v89 = vperm.slane %v87, 0
    %vm91 = vcmask 662528
    %v93 = vsel %vm91, %v75, 0
    %vm95 = vcmask 1040384
    %v97 = vsel %vm95, %v86, 0
    %99 = vmatpush.msra.mxu0 0.0
    %100 = vmatpush.msra.mxu0 0.0
    %101 = vmatpush.msra.mxu0 0.0
    %102 = vmatpush.msra.mxu0 0.0
    %103 = vmatpush.msra.mxu0 0.0
    %104 = vmatpush.msra.mxu0 %v97
    %105 = vmatpush.msra.mxu0 %v85
    %106 = vmatpush.msra.mxu0 %v84
    %107 = vmatpush.msra.mxu0 %v83
    %108 = vmatpush.msra.mxu0 %v82
    %109 = vmatpush.msra.mxu0 %v81
    %110 = vmatpush.msra.mxu0 %v80
    %111 = vmatpush.msra.mxu0 %v79
    %112 = vmatpush.msra.mxu0 %v78
    %113 = vmatpush.msra.mxu0 %v77
    %114 = vmatpush.msra.mxu0 %v76
    %115 = vmatmul.f32.gmra.mxu0 %v93
    %v116 = vpop.f32.mrf.mxu0
    %v117 = vadd.f32 %v89, %v116
    %118 = vdwg.mxu0
    %v119 = vld [vmem:[%s2] sm:$0x1]
    %v120 = vld [vmem:[%s3] sm:$0x1]
    %v122 = vperm.slane %v120, 0
    %v124 = vmul.f32 %v122, %v74
    %v125 = vmul.f32 %v124, 1.442695
    %v126 = vpow.pop %v125
    %v128 = vperm.slane %v119, 0
    %v130 = vmul.f32 %v128, %v126
    %v131 = vld [vmem:[%s4] sm:$0x1]
    %v133 = vperm.slane %v131, 0
    %v135 = vmul.f32 %v133, %v75
    %v136 = vmul.f32 %v135, %v75
    %v137 = vadd.f32 %v136, %v117
    %v138 = vadd.f32 %v130, %v137
    %139 = vst.msk [vmem:[#allocation8] sm:$0xff] %vm91, %v138
    // Predicated region
    $region42: #{tpu_custom_call.1} parent=1 // pred_check
      _
    $region43: #{tpu_custom_call.1} parent=1 // pred_check_branch
      %141 = sbr.rel (0) target = $region45
    $region44: #{tpu_custom_call.1} parent=1 // pred_region
      %143 = vsyncadd [#allocation4], 96
      %s144 = sshll.u32 [#allocation8], 4
      %s145 = int_to_ptr.vmem [resolvable:$true] %s144
      %s146 = sshll.u32 %s7, 4
      %s147 = int_to_ptr.hbm [resolvable:$true] %s146
      %152 = dma.vmem_to_hbm [thread:$0]  %s145, 32, %s147, [#allocation4], 32, 32, 2
    $region45: #{tpu_custom_call.1} parent=1 // pred_fallthru
      _
    // Predicated region
    $region46: #{tpu_custom_call.1} parent=1 // pred_check
      _
    $region47: #{tpu_custom_call.1} parent=1 // pred_check_branch
      %154 = sbr.rel (0) target = $region49
    $region48: #{tpu_custom_call.1} parent=1 // pred_region
      %156 = dma.done [#allocation4], 128
    $region49: #{tpu_custom_call.1} parent=1 // pred_fallthru
      _
    %157 = vsyncpa [#allocation3], 1
    %158 = vsyncpa [#allocation6], 1
    %159 = vsyncpa [#allocation4], 1

</llo_original>
